<compile_context>
chip_gen: v7x
topology: tpu7x:2x2x1
jax: 0.10.0
libtpu: 0.0.40
codegen_flags: <defaults>
</compile_context>

<pallas_src>
import jax
import jax.numpy as jnp
from jax.experimental import pallas as pl
from jax.experimental.pallas import tpu as pltpu


def _round_up(x, m):
    return ((x + m - 1) // m) * m


def _vmem_capacity_bytes():
    try:
        info = pltpu.get_tpu_info()
        cap = getattr(info, "vmem_capacity_bytes", None)
        if cap:
            return int(cap)
    except Exception:
        pass
    return 64 << 20  # conservative default (v7x per-core VMEM)


def _distogram_sym_kernel(ti_ref, tj_ref, z_ij_ref, z_ji_ref, w_ref, b_ref,
                          out_ref, sym_ref):
    t = pl.program_id(1)
    m = pl.program_id(2)
    i = ti_ref[t]
    j = tj_ref[t]

    T, _, nb = sym_ref.shape
    C = w_ref.shape[0]

    @pl.when(m == 0)
    def _():
        # Symmetrize in the input domain (native dtype) -> a single MXU matmul
        # with f32 accumulation; no f32 logits pair is ever materialized.
        z_ij = z_ij_ref[...].reshape(T, T, C)
        z_ji_t = pltpu.einshape("pqc->qpc", z_ji_ref[...].reshape(T, T, C))
        z_sym = z_ij + z_ji_t
        logits = jnp.dot(z_sym.reshape(T * T, C), w_ref[...],
                         preferred_element_type=jnp.float32)
        sym = logits.reshape(T, T, nb) * 0.5 + b_ref[...].astype(jnp.float32)
        sym_c = sym.astype(out_ref.dtype)
        sym_ref[...] = sym_c                       # carried to the m == 1 step
        out_ref[...] = sym_c.reshape(1, T, T, nb)  # out[b, i, j]

    # Mirrored tile: out[b, j, i] = out[b, i, j]^T (residue axes only).
    # For diagonal pairs (i == j) the output block index is unchanged from the
    # m == 0 step, so the resident block already holds the (symmetric) tile
    # and nothing needs to be written.
    @pl.when((m == 1) & (i != j))
    def _():
        out_ref[...] = pltpu.einshape("pqc->qpc",
                                      sym_ref[...]).reshape(1, T, T, nb)


def _distogram_asym_kernel(z_ref, w_ref, b_ref, o_ref):
    _, T1, T2, nb = o_ref.shape
    C = w_ref.shape[0]
    z2 = z_ref[...].reshape(T1 * T2, C)                      # no f32 upcast
    logits = jnp.dot(z2, w_ref[...], preferred_element_type=jnp.float32)
    logits = logits + b_ref[...].astype(jnp.float32)
    o_ref[...] = logits.reshape(1, T1, T2, nb).astype(o_ref.dtype)


def distogram_head(z, weight, bias, *, asymmetry=False, tile=None):
    """z: [B, N, N, C_z]; weight: [C_z, no_bins]; bias: [no_bins]."""
    B, N, N2, C = z.shape
    assert N == N2, "pair embedding must be square in the residue axes"
    C2, nb = weight.shape
    assert C2 == C and bias.shape == (nb,)

    T = tile if tile is not None else min(128, N)
    assert N % T == 0, "N_res must be divisible by the pair tile size"
    # dtype-aware sublane granule: f32 -> 8, bf16 -> 16, int8/fp8 -> 32
    granule = max(8, 32 // z.dtype.itemsize)
    assert T == N or T % granule == 0, (
        f"tile must be a multiple of {granule} for dtype {z.dtype}")

    out_dtype = z.dtype
    bias2d = bias.reshape(1, nb)

    dz = z.dtype.itemsize
    dout = jnp.dtype(out_dtype).itemsize
    dw = weight.dtype.itemsize

    cost = pl.CostEstimate(
        flops=2 * B * N * N * C * nb,
        transcendentals=0,
        bytes_accessed=z.size * dz + B * N * N * nb * dout + C * nb * dw,
    )

    # Honest, lane-padding-aware VMEM accounting.
    c_pad = _round_up(C, 128)
    nb_pad = _round_up(nb, 128)
    z_buf = T * T * c_pad * dz                       # one z tile buffer
    out_buf = T * T * nb_pad * dout                  # one output tile buffer
    w_buf = _round_up(C, 8) * nb_pad * dw + nb_pad * 4
    f32_tile = T * T * nb_pad * 4                    # f32 logits temporary

    vmem_cap = _vmem_capacity_bytes()
    vmem_ceiling = int(vmem_cap * 0.85)              # headroom (v7x: ~54 MiB)

    if asymmetry:
        needed = 2 * z_buf + 2 * out_buf + 2 * w_buf + (z_buf + f32_tile)
        vmem_limit = min(vmem_ceiling, max(32 << 20, int(1.25 * needed)))
        return pl.pallas_call(
            _distogram_asym_kernel,
            out_shape=jax.ShapeDtypeStruct((B, N, N, nb), out_dtype),
            grid_spec=pltpu.PrefetchScalarGridSpec(
                num_scalar_prefetch=0,
                grid=(B, N // T, N // T),
                in_specs=[
                    pl.BlockSpec((1, T, T, C), lambda b, i, j: (b, i, j, 0)),
                    pl.BlockSpec((C, nb), lambda b, i, j: (0, 0)),
                    pl.BlockSpec((1, nb), lambda b, i, j: (0, 0)),
                ],
                out_specs=pl.BlockSpec((1, T, T, nb), lambda b, i, j: (b, i, j, 0)),
            ),
            compiler_params=pltpu.CompilerParams(
                dimension_semantics=("parallel", "parallel", "parallel"),
                vmem_limit_bytes=vmem_limit,
            ),
            cost_estimate=cost,
        )(z, weight, bias2d)

    # Symmetric (default) path: upper-triangular tile pairs only.
    n_t = N // T
    pairs = [(i, j) for i in range(n_t) for j in range(i, n_t)]
    ti_arr = jnp.asarray([p[0] for p in pairs], dtype=jnp.int32)
    tj_arr = jnp.asarray([p[1] for p in pairs], dtype=jnp.int32)
    n_pairs = len(pairs)

    needed = (2 * 2 * z_buf            # two z streams, double-buffered
              + 2 * out_buf            # double-buffered output block
              + out_buf                # sym scratch (out dtype)
              + 2 * w_buf
              + z_buf + f32_tile)      # z_sym + f32 logits temporaries
    vmem_limit = min(vmem_ceiling, max(32 << 20, int(1.25 * needed)))

    def _z_ij_map(b, t, m, it, jt):
        return (b, it[t], jt[t], 0)

    def _z_ji_map(b, t, m, it, jt):
        return (b, jt[t], it[t], 0)

    def _out_map(b, t, m, it, jt):
        i = it[t]
        j = jt[t]
        # m == 0 -> (i, j);  m == 1 -> (j, i)   (scalar arithmetic select)
        row = i + (j - i) * m
        col = j + (i - j) * m
        return (b, row, col, 0)

    return pl.pallas_call(
        _distogram_sym_kernel,
        out_shape=jax.ShapeDtypeStruct((B, N, N, nb), out_dtype),
        grid_spec=pltpu.PrefetchScalarGridSpec(
            num_scalar_prefetch=2,
            grid=(B, n_pairs, 2),
            in_specs=[
                pl.BlockSpec((1, T, T, C), _z_ij_map),
                pl.BlockSpec((1, T, T, C), _z_ji_map),
                pl.BlockSpec((C, nb), lambda b, t, m, it, jt: (0, 0)),
                pl.BlockSpec((1, nb), lambda b, t, m, it, jt: (0, 0)),
            ],
            out_specs=pl.BlockSpec((1, T, T, nb), _out_map),
            scratch_shapes=[
                pltpu.VMEM((T, T, nb), out_dtype),   # symmetrized tile carry
            ],
        ),
        compiler_params=pltpu.CompilerParams(
            # batch AND pair axes parallel -> megacore sharding even at B == 1;
            # the mirror axis carries the scratch and must stay sequential.
            dimension_semantics=("parallel", "parallel", "arbitrary"),
            vmem_limit_bytes=vmem_limit,
        ),
        cost_estimate=cost,
    )(ti_arr, tj_arr, z, z, weight, bias2d)


def distogram_head_ref(z, weight, bias, *, asymmetry=False):
    logits = jnp.einsum("bijc,cn->bijn", z, weight) + bias
    if not asymmetry:
        logits = (logits + jnp.swapaxes(logits, -2, -3)) / 2
    return logits


if __name__ == "__main__":
    # Small, module-consistent shapes: batch=2, N_res=16, c_z=32, no_bins=64.
    # tile=8 so the symmetric path exercises diagonal AND off-diagonal tiles.
    B, N, C_Z, NO_BINS, TILE = 2, 16, 32, 64, 8

    key = jax.random.PRNGKey(0)
    kz, kw, kb = jax.random.split(key, 3)

    z = jax.random.normal(kz, (B, N, N, C_Z), dtype=jnp.float32)
    # NOTE: the real module uses init='final' (zero-init); use random params so
    # the kernel's math is actually exercised.
    weight = jax.random.normal(kw, (C_Z, NO_BINS), dtype=jnp.float32) * 0.1
    bias = jax.random.normal(kb, (NO_BINS,), dtype=jnp.float32) * 0.1

    out = distogram_head(z, weight, bias, asymmetry=False, tile=TILE)
    out = jax.block_until_ready(out)
    ref = distogram_head_ref(z, weight, bias, asymmetry=False)
    assert out.shape == (B, N, N, NO_BINS)
    assert jnp.allclose(out, ref, atol=1e-4, rtol=1e-4)
    # sanity: symmetric in the two residue axes
    assert jnp.allclose(out, jnp.swapaxes(out, 1, 2), atol=1e-5, rtol=1e-5)

    out_a = distogram_head(z, weight, bias, asymmetry=True, tile=TILE)
    out_a = jax.block_until_ready(out_a)
    ref_a = distogram_head_ref(z, weight, bias, asymmetry=True)
    assert jnp.allclose(out_a, ref_a, atol=1e-4, rtol=1e-4)

    print("KERNEL_OK")
</pallas_src>

<mosaic_0001>
module attributes {stable_mosaic.version = 11 : i64} {
  func.func @_distogram_sym_kernel(%arg0: i32, %arg1: i32, %arg2: i32, %arg3: memref<3xi32, #tpu.memory_space<smem>>, %arg4: memref<3xi32, #tpu.memory_space<smem>>, %arg5: memref<1x8x8x32xf32, #tpu.memory_space<vmem>>, %arg6: memref<1x8x8x32xf32, #tpu.memory_space<vmem>>, %arg7: memref<32x64xf32, #tpu.memory_space<vmem>>, %arg8: memref<1x64xf32, #tpu.memory_space<vmem>>, %arg9: memref<1x8x8x64xf32, #tpu.memory_space<vmem>>, %arg10: memref<8x8x64xf32, #tpu.memory_space<vmem>>) attributes {dimension_semantics = [#tpu.dimension_semantics<parallel>, #tpu.dimension_semantics<parallel>, #tpu.dimension_semantics<arbitrary>], iteration_bounds = array<i64: 2, 3, 2>, scalar_prefetch = 2 : i64, scratch_operands = 1 : i64, tpu.core_type = #tpu.core_type<tc>, window_params = [{transform_indices = @transform_0, window_bounds = array<i64: 1, 8, 8, 32>}, {transform_indices = @transform_1, window_bounds = array<i64: 1, 8, 8, 32>}, {pipeline_mode = #tpu.pipeline_mode<synchronous>, transform_indices = @transform_2, window_bounds = array<i64: 32, 64>}, {pipeline_mode = #tpu.pipeline_mode<synchronous>, transform_indices = @transform_3, window_bounds = array<i64: 1, 64>}, {transform_indices = @transform_4, window_bounds = array<i64: 1, 8, 8, 64>}]} {
    %0 = arith.index_cast %arg1 : i32 to index
    %1 = memref.load %arg3[%0] : memref<3xi32, #tpu.memory_space<smem>>
    %2 = arith.index_cast %arg1 : i32 to index
    %3 = memref.load %arg4[%2] : memref<3xi32, #tpu.memory_space<smem>>
    %c0_i32 = arith.constant 0 : i32
    %4 = arith.cmpi eq, %arg2, %c0_i32 : i32
    %5 = arith.extui %4 : i1 to i32
    %c0_i32_0 = arith.constant 0 : i32
    %6 = arith.cmpi ne, %5, %c0_i32_0 : i32
    scf.if %6 {
      %c0 = arith.constant 0 : index
      %c0_2 = arith.constant 0 : index
      %c0_3 = arith.constant 0 : index
      %c0_4 = arith.constant 0 : index
      %12 = vector.load %arg5[%c0, %c0_2, %c0_3, %c0_4] : memref<1x8x8x32xf32, #tpu.memory_space<vmem>>, vector<1x8x8x32xf32>
      %13 = vector.shape_cast %12 : vector<1x8x8x32xf32> to vector<8x8x32xf32>
      %c0_5 = arith.constant 0 : index
      %c0_6 = arith.constant 0 : index
      %c0_7 = arith.constant 0 : index
      %c0_8 = arith.constant 0 : index
      %14 = vector.load %arg6[%c0_5, %c0_6, %c0_7, %c0_8] : memref<1x8x8x32xf32, #tpu.memory_space<vmem>>, vector<1x8x8x32xf32>
      %15 = vector.shape_cast %14 : vector<1x8x8x32xf32> to vector<8x8x32xf32>
      %16 = tpu.transpose %15, [1, 0, 2] : vector<8x8x32xf32> -> vector<8x8x32xf32>
      %17 = arith.addf %13, %16 : vector<8x8x32xf32>
      %18 = vector.shape_cast %17 : vector<8x8x32xf32> to vector<64x32xf32>
      %c0_9 = arith.constant 0 : index
      %c0_10 = arith.constant 0 : index
      %19 = vector.load %arg7[%c0_9, %c0_10] : memref<32x64xf32, #tpu.memory_space<vmem>>, vector<32x64xf32>
      %cst = arith.constant dense<0.000000e+00> : vector<64x64xf32>
      %20 = tpu.matmul %18, %19, %cst {dimension_numbers = #tpu.dot_dimension_numbers<[1], [0], [0], [1], [0, 0, 1, 1], [], []>} : vector<64x32xf32>, vector<32x64xf32>, vector<64x64xf32> -> vector<64x64xf32>
      %21 = vector.shape_cast %20 : vector<64x64xf32> to vector<8x8x64xf32>
      %cst_11 = arith.constant 5.000000e-01 : f32
      %22 = vector.broadcast %cst_11 : f32 to vector<8x8x64xf32>
      %23 = arith.mulf %21, %22 : vector<8x8x64xf32>
      %c0_12 = arith.constant 0 : index
      %c0_13 = arith.constant 0 : index
      %24 = vector.load %arg8[%c0_12, %c0_13] : memref<1x64xf32, #tpu.memory_space<vmem>>, vector<1x64xf32>
      %25 = vector.shape_cast %24 : vector<1x64xf32> to vector<1x1x64xf32>
      %26 = vector.broadcast %25 : vector<1x1x64xf32> to vector<8x8x64xf32>
      %27 = arith.addf %23, %26 : vector<8x8x64xf32>
      %c0_14 = arith.constant 0 : index
      %c0_15 = arith.constant 0 : index
      %c0_16 = arith.constant 0 : index
      %28 = vector.load %arg10[%c0_14, %c0_15, %c0_16] : memref<8x8x64xf32, #tpu.memory_space<vmem>>, vector<8x8x64xf32>
      tpu.vector_store %arg10[%c0_14, %c0_15, %c0_16], %27 {strides = array<i32>} : memref<8x8x64xf32, #tpu.memory_space<vmem>>, vector<8x8x64xf32>,
      %29 = vector.shape_cast %27 : vector<8x8x64xf32> to vector<1x8x8x64xf32>
      %c0_17 = arith.constant 0 : index
      %c0_18 = arith.constant 0 : index
      %c0_19 = arith.constant 0 : index
      %c0_20 = arith.constant 0 : index
      %30 = vector.load %arg9[%c0_17, %c0_18, %c0_19, %c0_20] : memref<1x8x8x64xf32, #tpu.memory_space<vmem>>, vector<1x8x8x64xf32>
      tpu.vector_store %arg9[%c0_17, %c0_18, %c0_19, %c0_20], %29 {strides = array<i32>} : memref<1x8x8x64xf32, #tpu.memory_space<vmem>>, vector<1x8x8x64xf32>,
    } else {
    }
    %c1_i32 = arith.constant 1 : i32
    %7 = arith.cmpi eq, %arg2, %c1_i32 : i32
    %8 = arith.cmpi ne, %1, %3 : i32
    %9 = arith.andi %7, %8 : i1
    %10 = arith.extui %9 : i1 to i32
    %c0_i32_1 = arith.constant 0 : i32
    %11 = arith.cmpi ne, %10, %c0_i32_1 : i32
    scf.if %11 {
      %c0 = arith.constant 0 : index
      %c0_2 = arith.constant 0 : index
      %c0_3 = arith.constant 0 : index
      %12 = vector.load %arg10[%c0, %c0_2, %c0_3] : memref<8x8x64xf32, #tpu.memory_space<vmem>>, vector<8x8x64xf32>
      %13 = tpu.transpose %12, [1, 0, 2] : vector<8x8x64xf32> -> vector<8x8x64xf32>
      %14 = vector.shape_cast %13 : vector<8x8x64xf32> to vector<1x8x8x64xf32>
      %c0_4 = arith.constant 0 : index
      %c0_5 = arith.constant 0 : index
      %c0_6 = arith.constant 0 : index
      %c0_7 = arith.constant 0 : index
      %15 = vector.load %arg9[%c0_4, %c0_5, %c0_6, %c0_7] : memref<1x8x8x64xf32, #tpu.memory_space<vmem>>, vector<1x8x8x64xf32>
      tpu.vector_store %arg9[%c0_4, %c0_5, %c0_6, %c0_7], %14 {strides = array<i32>} : memref<1x8x8x64xf32, #tpu.memory_space<vmem>>, vector<1x8x8x64xf32>,
    } else {
    }
    return
  }
  func.func @transform_0(%arg0: i32, %arg1: i32, %arg2: i32, %arg3: memref<3xi32, #tpu.memory_space<smem>>, %arg4: memref<3xi32, #tpu.memory_space<smem>>) -> (i32, i32, i32, i32) {
    %0 = arith.index_cast %arg1 : i32 to index
    %1 = memref.load %arg3[%0] : memref<3xi32, #tpu.memory_space<smem>>
    %2 = arith.index_cast %arg1 : i32 to index
    %3 = memref.load %arg4[%2] : memref<3xi32, #tpu.memory_space<smem>>
    %c0_i32 = arith.constant 0 : i32
    %c0_i32_0 = arith.constant 0 : i32
    return %arg0, %1, %3, %c0_i32 : i32, i32, i32, i32
  }
  func.func @transform_1(%arg0: i32, %arg1: i32, %arg2: i32, %arg3: memref<3xi32, #tpu.memory_space<smem>>, %arg4: memref<3xi32, #tpu.memory_space<smem>>) -> (i32, i32, i32, i32) {
    %0 = arith.index_cast %arg1 : i32 to index
    %1 = memref.load %arg4[%0] : memref<3xi32, #tpu.memory_space<smem>>
    %2 = arith.index_cast %arg1 : i32 to index
    %3 = memref.load %arg3[%2] : memref<3xi32, #tpu.memory_space<smem>>
    %c0_i32 = arith.constant 0 : i32
    %c0_i32_0 = arith.constant 0 : i32
    return %arg0, %1, %3, %c0_i32 : i32, i32, i32, i32
  }
  func.func @transform_2(%arg0: i32, %arg1: i32, %arg2: i32, %arg3: memref<3xi32, #tpu.memory_space<smem>>, %arg4: memref<3xi32, #tpu.memory_space<smem>>) -> (i32, i32) {
    %c0_i32 = arith.constant 0 : i32
    %c0_i32_0 = arith.constant 0 : i32
    %c0_i32_1 = arith.constant 0 : i32
    return %c0_i32, %c0_i32_0 : i32, i32
  }
  func.func @transform_3(%arg0: i32, %arg1: i32, %arg2: i32, %arg3: memref<3xi32, #tpu.memory_space<smem>>, %arg4: memref<3xi32, #tpu.memory_space<smem>>) -> (i32, i32) {
    %c0_i32 = arith.constant 0 : i32
    %c0_i32_0 = arith.constant 0 : i32
    %c0_i32_1 = arith.constant 0 : i32
    return %c0_i32, %c0_i32_0 : i32, i32
  }
  func.func @transform_4(%arg0: i32, %arg1: i32, %arg2: i32, %arg3: memref<3xi32, #tpu.memory_space<smem>>, %arg4: memref<3xi32, #tpu.memory_space<smem>>) -> (i32, i32, i32, i32) {
    %0 = arith.index_cast %arg1 : i32 to index
    %1 = memref.load %arg3[%0] : memref<3xi32, #tpu.memory_space<smem>>
    %2 = arith.index_cast %arg1 : i32 to index
    %3 = memref.load %arg4[%2] : memref<3xi32, #tpu.memory_space<smem>>
    %4 = arith.subi %3, %1 : i32
    %5 = arith.muli %4, %arg2 : i32
    %6 = arith.addi %1, %5 : i32
    %7 = arith.subi %1, %3 : i32
    %8 = arith.muli %7, %arg2 : i32
    %9 = arith.addi %3, %8 : i32
    %c0_i32 = arith.constant 0 : i32
    %c0_i32_0 = arith.constant 0 : i32
    return %arg0, %6, %9, %c0_i32 : i32, i32, i32, i32
  }
}

</mosaic_0001>

<llo_original>
// kernel: tpu_custom_call.1
$region0: #{tpu_custom_call.1}
  #allocation0 [shape = 'u32[]', space=smem, size = 0x4, offset = 0x4, fixed_abs, tag = 'smem constant byte address 0x4 - core index']
  #allocation1 [shape = 'u32[144,128]{1,0:T(1,128)}', space=vmem, size = 0x12000, scoped, tag = 'internal scratch']
  #allocation2 [shape = 'f32[8,8,64]{2,1,0:T(8,128)}', space=vmem, size = 0x8000, scoped, tag = 'scratch operand']
  #allocation3 [shape = 's32[1]{0}', space=sflag, size = 0x4, scoped, tag = 'scoped memory for tpu_custom_call.1']
  #allocation4 [shape = 'u8[512]{0}', space=smem, size = 0x200, scoped, tag = 'prefetched SMEM operand 0']
  #allocation5 [shape = 'u8[512]{0}', space=smem, size = 0x200, scoped, tag = 'prefetched SMEM operand 1']
  %s0 = inlined_call_operand.hbm [shape: s32[3], index: 0, kind: input, shape index: {}]
  %s1 = inlined_call_operand.vmem [shape: s32[3], index: 1, kind: input, shape index: {}]
  %s2 = inlined_call_operand.hbm [shape: f32[2,16,16,32], index: 2, kind: input, shape index: {}]
  %s3 = inlined_call_operand.hbm [shape: f32[2,16,16,32], index: 3, kind: input, shape index: {}]
  %s4 = inlined_call_operand.hbm [shape: f32[32,64], index: 4, kind: input, shape index: {}]
  %s5 = inlined_call_operand.vmem [shape: f32[1,64], index: 5, kind: input, shape index: {}]
  %s6 = inlined_call_operand.hbm [shape: f32[2,16,16,64], index: 6, kind: output, shape index: {}]
  %s7 = sld [smem:[#allocation0]]
  $region69: #{tpu_custom_call.1} parent=0
    _
  %s9 = ssub.s32 1, %s7
  %s10 = scalar_select 0, %s9, %s7
  %12 = dma.hbm_to_smem %s0, 16, [#allocation4], [#allocation3]
  %s13 = sshll.u32 %s1, 4
  %s14 = int_to_ptr.vmem [resolvable:$true] %s13
  %16 = dma.vmem_to_smem %s14, 16, [#allocation5], [#allocation3]
  %17 = dma.done [#allocation3], 32
  %18 = sfence
  $region1: #{tpu_custom_call.1} parent=0
    #allocation6 [shape = 'u8[65536]{0}', space=vmem, size = 0x10000, scoped, tag = 'input window, operand 2']
    #allocation7 [shape = 's32[2]{0}', space=sflag, size = 0x8, scoped, tag = 'scoped memory for tpu_custom_call.1']
    #allocation8 [shape = 's32[2]{0}', space=sflag, size = 0x8, scoped, tag = 'scoped memory for tpu_custom_call.1']
    #allocation9 [shape = 'u8[65536]{0}', space=vmem, size = 0x10000, scoped, tag = 'input window, operand 3']
    #allocation10 [shape = 's32[2]{0}', space=sflag, size = 0x8, scoped, tag = 'scoped memory for tpu_custom_call.1']
    #allocation11 [shape = 'u8[16384]{0}', space=vmem, size = 0x4000, scoped, tag = 'input window, operand 4, single buffered']
    #allocation12 [shape = 'u8[65536]{0}', space=vmem, size = 0x10000, scoped, tag = 'output window, operand 0']
    %19 = vsyncpa [#allocation7], 0
    %s20 = scalar_lea.sflag [#allocation7], 1
    %21 = vsyncpa %s20, 0
    %22 = vsyncpa [#allocation10], 0
    %s23 = scalar_lea.sflag [#allocation10], 1
    %24 = vsyncpa %s23, 0
    %25 = vsyncpa [#allocation8], 0
    %s26 = scalar_lea.sflag [#allocation8], 1
    %27 = vsyncpa %s26, 0
    loop: start=0, step=1, limit=14
    $region2: #{tpu_custom_call.1} parent=1 // loop_pre_header
      _
    $region3: #{tpu_custom_call.1} parent=1 // loop_header
      %s29 = sphi 0, %s33
      %p30 = scmp.ge.s32.totalorder %s29, 14
      %s36 = sphi 0, %s55
      %s37 = sphi 0, %s51
      %s38 = sphi 0, %s47
      %s39 = sphi 0, %s36
      %s40 = sphi 0, %s37
      %s41 = sphi 0, %s38
      %s42 = sphi 0, %s39
      %s43 = sphi 0, %s40
      %s44 = sphi 0, %s41
      %s66 = sphi 0, %s68
      %s69 = sphi 0, %s66
      %s70 = sphi 0, %s69
      %s86 = sphi 0, %s70
      %s100 = sphi 0, %s102
      %s103 = sphi 0, %s100
      %s104 = sphi 0, %s103
      %s120 = sphi 0, %s104
      %s124 = sphi 0, %s124
      %s126 = sphi 0, %s124
      %s127 = sphi 0, %s126
      %s141 = sphi 0, %s127
      %s145 = sphi 0, %s145
      %s147 = sphi 0, %s145
      %s148 = sphi 0, %s147
      %s162 = sphi 0, %s148
      %s188 = sphi 0, %s190
      %s191 = sphi 0, %s188
      %s192 = sphi 0, %s191
      %s208 = sphi 0, %s192
    $region4: #{tpu_custom_call.1} parent=1 // loop_header_branch
      %32 = sbr.rel (%p30) target = $region8
    $region5: #{tpu_custom_call.1} parent=1 // loop_body
      %s34 = ssub.s32 %s29, 1
      %s35 = ssub.s32 %s29, 2
      %s45 = sadd.s32 1, %s38
      %p46 = scmp.ge.s32.totalorder %s45, 2
      %s47 = scalar_select %p46, 0, %s45
      %s48 = sadd.s32 1, %s37
      %s49 = scalar_select %p46, %s48, %s37
      %p50 = scmp.ge.s32.totalorder %s49, 3
      %s51 = scalar_select %p50, 0, %s49
      %s52 = sadd.s32 1, %s36
      %s53 = scalar_select %p50, %s52, %s36
      %p54 = scmp.ge.s32.totalorder %s53, 2
      %s55 = scalar_select %p54, 0, %s53
      %s56 = sld [smem:[#allocation4 + %s37]]
      %s57 = sld [smem:[#allocation5 + %s37]]
      %s58 = sld [smem:[#allocation4 + %s51]]
      %s59 = sld [smem:[#allocation5 + %s51]]
      %s60 = ssub.s32 %s36, %s55
      %s61 = ssub.s32 %s56, %s58
      %s62 = sor.u32 %s60, %s61
      %s63 = ssub.s32 %s57, %s59
      %s64 = sor.u32 %s62, %s63
      %p65 = scmp.eq.s32.totalorder %s64, 0
      %s67 = sadd.s32 %s66, 1
      %s68 = scalar_select %p65, %s66, %s67
      %p71 = pneg %p65
      %p72 = scmp.eq.s32.totalorder %s29, 11
      %p73 = por %p71, %p72
      %p74 = scmp.ne.s32.totalorder %s66, %s69
      %p75 = scmp.eq.s32.totalorder %s29, 0
      %p76 = por %p74, %p75
      %p77 = scmp.ne.s32.totalorder %s66, %s69
      %p78 = scmp.eq.s32.totalorder %s34, 11
      %p79 = por %p77, %p78
      %p80 = scmp.ne.s32.totalorder %s69, %s70
      %p81 = scmp.eq.s32.totalorder %s34, 0
      %p82 = por %p80, %p81
      %p83 = scmp.ne.s32.totalorder %s69, %s70
      %p84 = scmp.eq.s32.totalorder %s35, 11
      %p85 = por %p83, %p84
      %p87 = scmp.ne.s32.totalorder %s70, %s86
      %p88 = scmp.eq.s32.totalorder %s35, 0
      %p89 = por %p87, %p88
      %s90 = sld [smem:[#allocation5 + %s37]]
      %s91 = sld [smem:[#allocation4 + %s37]]
      %s92 = sld [smem:[#allocation5 + %s51]]
      %s93 = sld [smem:[#allocation4 + %s51]]
      %s94 = ssub.s32 %s36, %s55
      %s95 = ssub.s32 %s90, %s92
      %s96 = sor.u32 %s94, %s95
      %s97 = ssub.s32 %s91, %s93
      %s98 = sor.u32 %s96, %s97
      %p99 = scmp.eq.s32.totalorder %s98, 0
      %s101 = sadd.s32 %s100, 1
      %s102 = scalar_select %p99, %s100, %s101
      %p105 = pneg %p99
      %p106 = scmp.eq.s32.totalorder %s29, 11
      %p107 = por %p105, %p106
      %p108 = scmp.ne.s32.totalorder %s100, %s103
      %p109 = scmp.eq.s32.totalorder %s29, 0
      %p110 = por %p108, %p109
      %p111 = scmp.ne.s32.totalorder %s100, %s103
      %p112 = scmp.eq.s32.totalorder %s34, 11
      %p113 = por %p111, %p112
      %p114 = scmp.ne.s32.totalorder %s103, %s104
      %p115 = scmp.eq.s32.totalorder %s34, 0
      %p116 = por %p114, %p115
      %p117 = scmp.ne.s32.totalorder %s103, %s104
      %p118 = scmp.eq.s32.totalorder %s35, 11
      %p119 = por %p117, %p118
      %p121 = scmp.ne.s32.totalorder %s104, %s120
      %p122 = scmp.eq.s32.totalorder %s35, 0
      %p123 = por %p121, %p122
      %s125 = sadd.s32 %s124, 1
      %p128 = scmp.eq.s32.totalorder %s29, 11
      %p129 = scmp.ne.s32.totalorder %s124, %s126
      %p130 = scmp.eq.s32.totalorder %s29, 0
      %p131 = por %p129, %p130
      %p132 = scmp.ne.s32.totalorder %s124, %s126
      %p133 = scmp.eq.s32.totalorder %s34, 11
      %p134 = por %p132, %p133
      %p135 = scmp.ne.s32.totalorder %s126, %s127
      %p136 = scmp.eq.s32.totalorder %s34, 0
      %p137 = por %p135, %p136
      %p138 = scmp.ne.s32.totalorder %s126, %s127
      %p139 = scmp.eq.s32.totalorder %s35, 11
      %p140 = por %p138, %p139
      %p142 = scmp.ne.s32.totalorder %s127, %s141
      %p143 = scmp.eq.s32.totalorder %s35, 0
      %p144 = por %p142, %p143
      %s146 = sadd.s32 %s145, 1
      %p149 = scmp.eq.s32.totalorder %s29, 11
      %p150 = scmp.ne.s32.totalorder %s145, %s147
      %p151 = scmp.eq.s32.totalorder %s29, 0
      %p152 = por %p150, %p151
      %p153 = scmp.ne.s32.totalorder %s145, %s147
      %p154 = scmp.eq.s32.totalorder %s34, 11
      %p155 = por %p153, %p154
      %p156 = scmp.ne.s32.totalorder %s147, %s148
      %p157 = scmp.eq.s32.totalorder %s34, 0
      %p158 = por %p156, %p157
      %p159 = scmp.ne.s32.totalorder %s147, %s148
      %p160 = scmp.eq.s32.totalorder %s35, 11
      %p161 = por %p159, %p160
      %p163 = scmp.ne.s32.totalorder %s148, %s162
      %p164 = scmp.eq.s32.totalorder %s35, 0
      %p165 = por %p163, %p164
      %s166 = sld [smem:[#allocation4 + %s37]]
      %s167 = sld [smem:[#allocation5 + %s37]]
      %s168 = ssub.s32 %s167, %s166
      %s169 = smul.u32 %s168, %s38
      %s170 = sadd.s32 %s166, %s169
      %s171 = ssub.s32 %s166, %s167
      %s172 = smul.u32 %s171, %s38
      %s173 = sadd.s32 %s167, %s172
      %s174 = sld [smem:[#allocation4 + %s51]]
      %s175 = sld [smem:[#allocation5 + %s51]]
      %s176 = ssub.s32 %s175, %s174
      %s177 = smul.u32 %s176, %s47
      %s178 = sadd.s32 %s174, %s177
      %s179 = ssub.s32 %s174, %s175
      %s180 = smul.u32 %s179, %s47
      %s181 = sadd.s32 %s175, %s180
      %s182 = ssub.s32 %s36, %s55
      %s183 = ssub.s32 %s170, %s178
      %s184 = sor.u32 %s182, %s183
      %s185 = ssub.s32 %s173, %s181
      %s186 = sor.u32 %s184, %s185
      %p187 = scmp.eq.s32.totalorder %s186, 0
      %s189 = sadd.s32 %s188, 1
      %s190 = scalar_select %p187, %s188, %s189
      %p193 = pneg %p187
      %p194 = scmp.eq.s32.totalorder %s29, 11
      %p195 = por %p193, %p194
      %p196 = scmp.ne.s32.totalorder %s188, %s191
      %p197 = scmp.eq.s32.totalorder %s29, 0
      %p198 = por %p196, %p197
      %p199 = scmp.ne.s32.totalorder %s188, %s191
      %p200 = scmp.eq.s32.totalorder %s34, 11
      %p201 = por %p199, %p200
      %p202 = scmp.ne.s32.totalorder %s191, %s192
      %p203 = scmp.eq.s32.totalorder %s34, 0
      %p204 = por %p202, %p203
      %p205 = scmp.ne.s32.totalorder %s191, %s192
      %p206 = scmp.eq.s32.totalorder %s35, 11
      %p207 = por %p205, %p206
      %p209 = scmp.ne.s32.totalorder %s192, %s208
      %p210 = scmp.eq.s32.totalorder %s35, 0
      %p211 = por %p209, %p210
      %p212 = scmp.le.s32.totalorder 1, %s29
      %p213 = scmp.lt.s32.totalorder %s29, 13
      %p214 = pnand %p212, %p213
      %p215 = pneg %p214
      // Predicated region
      $region9: #{tpu_custom_call.1} parent=5 // pred_check
        _
      $region10: #{tpu_custom_call.1} parent=5 // pred_check_branch
        %217 = sbr.rel (%p214) target = $region12
      $region11: #{tpu_custom_call.1} parent=5 // pred_region
        %s218 = ssub.s32 %s29, 1
        // Predicated region
        $region13: #{tpu_custom_call.1} parent=11 // pred_check
          %p219 = pneg %p137
        $region14: #{tpu_custom_call.1} parent=11 // pred_check_branch
          %221 = sbr.rel (%p219) target = $region16
        $region15: #{tpu_custom_call.1} parent=11 // pred_region
          %s223 = ssub.s32 512, 512
          %224 = vsyncadd [#allocation10], %s223
          %s225 = sshll.u32 [#allocation11], 4
          %s226 = int_to_ptr.vmem [resolvable:$true] %s225
          %231 = dma.hbm_to_vmem [thread:$0]  %s4, 512, %s226, [#allocation10], 128, 128, 8
        $region16: #{tpu_custom_call.1} parent=11 // pred_fallthru
          _
        // Predicated region
        $region17: #{tpu_custom_call.1} parent=11 // pred_check
          %p232 = pneg %p158
        $region18: #{tpu_custom_call.1} parent=11 // pred_check_branch
          %234 = sbr.rel (%p232) target = $region20
        $region19: #{tpu_custom_call.1} parent=11 // pred_region
          _
        $region20: #{tpu_custom_call.1} parent=11 // pred_fallthru
          _
      $region12: #{tpu_custom_call.1} parent=5 // pred_fallthru
        _
      %p235 = scmp.lt.s32.totalorder %s29, 12
      // Predicated region
      $region21: #{tpu_custom_call.1} parent=5 // pred_check
        %p236 = pneg %p235
      $region22: #{tpu_custom_call.1} parent=5 // pred_check_branch
        %238 = sbr.rel (%p236) target = $region24
      $region23: #{tpu_custom_call.1} parent=5 // pred_region
        // Predicated region
        $region25: #{tpu_custom_call.1} parent=23 // pred_check
          %p239 = pneg %p76
        $region26: #{tpu_custom_call.1} parent=23 // pred_check_branch
          %241 = sbr.rel (%p239) target = $region28
        $region27: #{tpu_custom_call.1} parent=23 // pred_region
          %s242 = sand.u32 %s66, 1
          %s243 = scalar_lea.sflag [#allocation7], %s242
          %s244 = sand.u32 %s66, 1
          %s245 = smul.addr %s244, 64
          %s246 = scalar_lea.vmem [#allocation6], %s245
          %s247 = sld [smem:[#allocation4 + %s37]]
          %s248 = sld [smem:[#allocation5 + %s37]]
          %s249 = smul.u32 8, %s247
          %s251 = ssub.s32 1024, 1024
          %252 = vsyncadd %s243, %s251
          %s253 = smul.addr %s249, 2
          %s254 = sadd.s32 %s248, %s253
          %s255 = smul.addr %s36, 32
          %s256 = sadd.s32 %s254, %s255
          %s257 = smul.addr %s256, 128
          %s258 = scalar_lea.hbm %s2, %s257
          %s259 = sshll.u32 %s246, 4
          %s260 = int_to_ptr.vmem [resolvable:$true] %s259
          %265 = dma.hbm_to_vmem [thread:$0]  %s258, 1024, %s260, %s243, 256, 128, 8
        $region28: #{tpu_custom_call.1} parent=23 // pred_fallthru
          _
        // Predicated region
        $region29: #{tpu_custom_call.1} parent=23 // pred_check
          %p266 = pneg %p110
        $region30: #{tpu_custom_call.1} parent=23 // pred_check_branch
          %268 = sbr.rel (%p266) target = $region32
        $region31: #{tpu_custom_call.1} parent=23 // pred_region
          %s269 = sand.u32 %s29, 1
          %s270 = scalar_lea.sflag [#allocation10], %s269
          %s271 = sand.u32 %s100, 1
          %s272 = smul.addr %s271, 64
          %s273 = scalar_lea.vmem [#allocation9], %s272
          %s274 = sld [smem:[#allocation5 + %s37]]
          %s275 = sld [smem:[#allocation4 + %s37]]
          %s276 = smul.u32 8, %s274
          %s278 = ssub.s32 1024, 1024
          %279 = vsyncadd %s270, %s278
          %s280 = smul.addr %s276, 2
          %s281 = sadd.s32 %s275, %s280
          %s282 = smul.addr %s36, 32
          %s283 = sadd.s32 %s281, %s282
          %s284 = smul.addr %s283, 128
          %s285 = scalar_lea.hbm %s3, %s284
          %s286 = sshll.u32 %s273, 4
          %s287 = int_to_ptr.vmem [resolvable:$true] %s286
          %292 = dma.hbm_to_vmem [thread:$0]  %s285, 1024, %s287, %s270, 256, 128, 8
        $region32: #{tpu_custom_call.1} parent=23 // pred_fallthru
          _
      $region24: #{tpu_custom_call.1} parent=5 // pred_fallthru
        _
      %p293 = scmp.le.s32.totalorder 1, %s29
      %p294 = scmp.lt.s32.totalorder %s29, 13
      %p295 = pnand %p293, %p294
      %p296 = pneg %p295
      // Predicated region
      $region33: #{tpu_custom_call.1} parent=5 // pred_check
        _
      $region34: #{tpu_custom_call.1} parent=5 // pred_check_branch
        %298 = sbr.rel (%p295) target = $region36
      $region35: #{tpu_custom_call.1} parent=5 // pred_region
        %s299 = ssub.s32 %s29, 1
        %s300 = sand.u32 %s69, 1
        %s301 = scalar_lea.sflag [#allocation7], %s300
        %s302 = sand.u32 %s69, 1
        %s303 = smul.addr %s302, 64
        %s304 = scalar_lea.vmem [#allocation6], %s303
        // Predicated region
        $region37: #{tpu_custom_call.1} parent=35 // pred_check
          %p305 = pneg %p82
        $region38: #{tpu_custom_call.1} parent=35 // pred_check_branch
          %307 = sbr.rel (%p305) target = $region40
        $region39: #{tpu_custom_call.1} parent=35 // pred_region
          %308 = dma.done %s301, 1024
        $region40: #{tpu_custom_call.1} parent=35 // pred_fallthru
          _
        %s309 = sand.u32 %s34, 1
        %s310 = scalar_lea.sflag [#allocation10], %s309
        %s311 = sand.u32 %s103, 1
        %s312 = smul.addr %s311, 64
        %s313 = scalar_lea.vmem [#allocation9], %s312
        // Predicated region
        $region41: #{tpu_custom_call.1} parent=35 // pred_check
          %p314 = pneg %p116
        $region42: #{tpu_custom_call.1} parent=35 // pred_check_branch
          %316 = sbr.rel (%p314) target = $region44
        $region43: #{tpu_custom_call.1} parent=35 // pred_region
          %317 = dma.done %s310, 1024
        $region44: #{tpu_custom_call.1} parent=35 // pred_fallthru
          _
        // Predicated region
        $region45: #{tpu_custom_call.1} parent=35 // pred_check
          %p318 = pneg %p137
        $region46: #{tpu_custom_call.1} parent=35 // pred_check_branch
          %320 = sbr.rel (%p318) target = $region48
        $region47: #{tpu_custom_call.1} parent=35 // pred_region
          %321 = dma.done [#allocation10], 512
        $region48: #{tpu_custom_call.1} parent=35 // pred_fallthru
          _
        %s322 = sand.u32 %s69, 1
        %s323 = scalar_lea.sflag [#allocation7], %s322
        %s324 = sand.u32 %s69, 1
        %s325 = smul.addr %s324, 64
        %s326 = scalar_lea.vmem [#allocation6], %s325
        %p327 = pneg %p82
        %p328 = pneg %p79
        %s329 = sand.u32 %s34, 1
        %s330 = scalar_lea.sflag [#allocation10], %s329
        %s331 = sand.u32 %s103, 1
        %s332 = smul.addr %s331, 64
        %s333 = scalar_lea.vmem [#allocation9], %s332
        %p334 = pneg %p116
        %p335 = pneg %p113
        %p336 = pneg %p137
        %p337 = pneg %p134
        %p338 = pneg %p158
        %p339 = pneg %p155
        %p340 = pneg %p204
        %p341 = pneg %p201
        %s342 = sand.u32 %s191, 1
        %s343 = scalar_lea.sflag [#allocation8], %s342
        %s344 = sand.u32 %s191, 1
        %s345 = smul.addr %s344, 64
        %s346 = scalar_lea.vmem [#allocation12], %s345
        %s347 = sld [smem:[#allocation4 + %s40]]
        %s348 = sld [smem:[#allocation5 + %s40]]
        %s349 = smul.u32 8, %s347
        %s350 = sld [smem:[#allocation5 + %s40]]
        %s351 = sld [smem:[#allocation4 + %s40]]
        %s352 = smul.u32 8, %s350
        %s353 = sld [smem:[#allocation4 + %s40]]
        %s354 = sld [smem:[#allocation5 + %s40]]
        %s355 = ssub.s32 %s354, %s353
        %s356 = smul.u32 %s355, %s41
        %s357 = sadd.s32 %s353, %s356
        %s358 = ssub.s32 %s353, %s354
        %s359 = smul.u32 %s358, %s41
        %s360 = sadd.s32 %s354, %s359
        %s361 = smul.u32 8, %s357
        %s362 = sld [smem:[#allocation4 + %s40]]
        %s363 = sld [smem:[#allocation5 + %s40]]
        %p364 = scmp.eq.s32.totalorder %s41, 0
        // Predicated region
        $region49: #{tpu_custom_call.1} parent=35 // pred_check
          %p365 = pneg %p364
        $region50: #{tpu_custom_call.1} parent=35 // pred_check_branch
          %367 = sbr.rel (%p365) target = $region52
        $region51: #{tpu_custom_call.1} parent=35 // pred_region
          %v368 = vld [vmem:[%s304] sm:$0xff]
          %v369 = vld [vmem:[%s304 + $0x8] sm:$0xff]
          %v370 = vld [vmem:[%s304 + $0x10] sm:$0xff]
          %v371 = vld [vmem:[%s304 + $0x18] sm:$0xff]
          %v372 = vld [vmem:[%s304 + $0x20] sm:$0xff]
          %v373 = vld [vmem:[%s304 + $0x28] sm:$0xff]
          %v374 = vld [vmem:[%s304 + $0x30] sm:$0xff]
          %v375 = vld [vmem:[%s304 + $0x38] sm:$0xff]
          %v376 = vld [vmem:[%s313] sm:$0xff]
          %v377 = vld [vmem:[%s313 + $0x8] sm:$0xff]
          %v378 = vld [vmem:[%s313 + $0x10] sm:$0xff]
          %v379 = vld [vmem:[%s313 + $0x18] sm:$0xff]
          %v380 = vld [vmem:[%s313 + $0x20] sm:$0xff]
          %v381 = vld [vmem:[%s313 + $0x28] sm:$0xff]
          %v382 = vld [vmem:[%s313 + $0x30] sm:$0xff]
          %v383 = vld [vmem:[%s313 + $0x38] sm:$0xff]
          %v384 = vcombine.low %v376, %v378
          %v385 = vcombine.high %v376, %v378
          %v387 = vunpack.c.l.s4 1983009808
          %v388 = vunpack.c.0.s8 %v387
          %v389 = vlaneseq
          %v390 = vshrl.u32 %v389, 7
          %v391 = vsub.s32 %v388, %v390
          %v392 = vrot.slane %v384, %v391
          %v394 = vunpack.c.l.s4 1983009808
          %v395 = vunpack.c.0.s8 %v394
          %v396 = vlaneseq
          %v397 = vshrl.u32 %v396, 7
          %v398 = vsub.s32 %v395, %v397
          %v399 = vrot.slane %v385, %v398
          %v400 = vcombine.low %v377, %v379
          %v401 = vcombine.high %v377, %v379
          %v403 = vunpack.c.l.s4 1983009808
          %v404 = vunpack.c.0.s8 %v403
          %v405 = vlaneseq
          %v406 = vshrl.u32 %v405, 7
          %v407 = vsub.s32 %v404, %v406
          %v408 = vrot.slane %v400, %v407
          %v410 = vunpack.c.l.s4 1983009808
          %v411 = vunpack.c.0.s8 %v410
          %v412 = vlaneseq
          %v413 = vshrl.u32 %v412, 7
          %v414 = vsub.s32 %v411, %v413
          %v415 = vrot.slane %v401, %v414
          %v416 = vcombine.low %v380, %v382
          %v417 = vcombine.high %v380, %v382
          %v419 = vunpack.c.l.s4 1983009808
          %v420 = vunpack.c.0.s8 %v419
          %v421 = vlaneseq
          %v422 = vshrl.u32 %v421, 7
          %v423 = vsub.s32 %v420, %v422
          %v424 = vrot.slane %v416, %v423
          %v426 = vunpack.c.l.s4 1983009808
          %v427 = vunpack.c.0.s8 %v426
          %v428 = vlaneseq
          %v429 = vshrl.u32 %v428, 7
          %v430 = vsub.s32 %v427, %v429
          %v431 = vrot.slane %v417, %v430
          %v432 = vcombine.low %v381, %v383
          %v433 = vcombine.high %v381, %v383
          %v435 = vunpack.c.l.s4 1983009808
          %v436 = vunpack.c.0.s8 %v435
          %v437 = vlaneseq
          %v438 = vshrl.u32 %v437, 7
          %v439 = vsub.s32 %v436, %v438
          %v440 = vrot.slane %v432, %v439
          %v442 = vunpack.c.l.s4 1983009808
          %v443 = vunpack.c.0.s8 %v442
          %v444 = vlaneseq
          %v445 = vshrl.u32 %v444, 7
          %v446 = vsub.s32 %v443, %v445
          %v447 = vrot.slane %v433, %v446
          %v448 = vcombine.low %v392, %v408
          %v449 = vcombine.high %v392, %v408
          %v451 = vunpack.c.l.s4 1934713408
          %v452 = vunpack.c.0.s8 %v451
          %v453 = vlaneseq
          %v454 = vshrl.u32 %v453, 7
          %v455 = vsub.s32 %v452, %v454
          %v456 = vrot.slane %v448, %v455
          %v458 = vunpack.c.l.s4 1934713408
          %v459 = vunpack.c.0.s8 %v458
          %v460 = vlaneseq
          %v461 = vshrl.u32 %v460, 7
          %v462 = vsub.s32 %v459, %v461
          %v463 = vrot.slane %v449, %v462
          %v464 = vcombine.low %v399, %v415
          %v465 = vcombine.high %v399, %v415
          %v467 = vunpack.c.l.s4 1934713408
          %v468 = vunpack.c.0.s8 %v467
          %v469 = vlaneseq
          %v470 = vshrl.u32 %v469, 7
          %v471 = vsub.s32 %v468, %v470
          %v472 = vrot.slane %v464, %v471
          %v474 = vunpack.c.l.s4 1934713408
          %v475 = vunpack.c.0.s8 %v474
          %v476 = vlaneseq
          %v477 = vshrl.u32 %v476, 7
          %v478 = vsub.s32 %v475, %v477
          %v479 = vrot.slane %v465, %v478
          %v480 = vcombine.low %v424, %v440
          %v481 = vcombine.high %v424, %v440
          %v483 = vunpack.c.l.s4 1934713408
          %v484 = vunpack.c.0.s8 %v483
          %v485 = vlaneseq
          %v486 = vshrl.u32 %v485, 7
          %v487 = vsub.s32 %v484, %v486
          %v488 = vrot.slane %v480, %v487
          %v490 = vunpack.c.l.s4 1934713408
          %v491 = vunpack.c.0.s8 %v490
          %v492 = vlaneseq
          %v493 = vshrl.u32 %v492, 7
          %v494 = vsub.s32 %v491, %v493
          %v495 = vrot.slane %v481, %v494
          %v496 = vcombine.low %v431, %v447
          %v497 = vcombine.high %v431, %v447
          %v499 = vunpack.c.l.s4 1934713408
          %v500 = vunpack.c.0.s8 %v499
          %v501 = vlaneseq
          %v502 = vshrl.u32 %v501, 7
          %v503 = vsub.s32 %v500, %v502
          %v504 = vrot.slane %v496, %v503
          %v506 = vunpack.c.l.s4 1934713408
          %v507 = vunpack.c.0.s8 %v506
          %v508 = vlaneseq
          %v509 = vshrl.u32 %v508, 7
          %v510 = vsub.s32 %v507, %v509
          %v511 = vrot.slane %v497, %v510
          %v512 = vcombine.low %v456, %v488
          %v513 = vcombine.high %v456, %v488
          %v514 = vcombine.low %v463, %v495
          %v515 = vcombine.high %v463, %v495
          %v516 = vcombine.low %v472, %v504
          %v517 = vcombine.high %v472, %v504
          %v518 = vcombine.low %v479, %v511
          %v519 = vcombine.high %v479, %v511
          %v520 = vadd.f32 %v368, %v512
          %v521 = vadd.f32 %v369, %v513
          %v522 = vadd.f32 %v370, %v514
          %v523 = vadd.f32 %v371, %v515
          %v524 = vadd.f32 %v372, %v516
          %v525 = vadd.f32 %v373, %v517
          %v526 = vadd.f32 %v374, %v518
          %v527 = vadd.f32 %v375, %v519
          %v528 = vld [vmem:[#allocation11] sm:$0xff]
          %v529 = vld [vmem:[#allocation11 + $0x8] sm:$0xff]
          %v530 = vld [vmem:[#allocation11 + $0x10] sm:$0xff]
          %v531 = vld [vmem:[#allocation11 + $0x18] sm:$0xff]
          %vm532 = vcmask 261120
          %v534 = vsel %vm532, %v520, 0
          %v537 = vsel %vm532, %v521, 0
          %v540 = vsel %vm532, %v522, 0
          %v543 = vsel %vm532, %v523, 0
          %v546 = vsel %vm532, %v524, 0
          %v549 = vsel %vm532, %v525, 0
          %v552 = vsel %vm532, %v526, 0
          %v555 = vsel %vm532, %v527, 0
          %557 = vmatprep.subr.mxu0 0.0
          %558 = vmatpush1.msra.mxu0 %v528
          %559 = vmatprep.subr.mxu0 0.0
          %560 = vmatpush1.msra.mxu0 %v529
          %561 = vmatprep.subr.mxu0 0.0
          %562 = vmatpush1.msra.mxu0 %v530
          %563 = vmatprep.subr.mxu0 0.0
          %564 = vmatpush1.msra.mxu0 %v531
          %565 = vmatprep.subr.mxu0 0.0
          %566 = vmatpush1.msra.mxu0 0.0
          %567 = vmatprep.subr.mxu0 0.0
          %568 = vmatpush1.msra.mxu0 0.0
          %569 = vmatprep.subr.mxu0 0.0
          %570 = vmatpush1.msra.mxu0 0.0
          %571 = vmatprep.subr.mxu0 0.0
          %572 = vmatpush1.msra.mxu0 0.0
          %573 = vmatprep.subr.mxu0 0.0
          %574 = vmatpush1.msra.mxu0 0.0
          %575 = vmatprep.subr.mxu0 0.0
          %576 = vmatpush1.msra.mxu0 0.0
          %577 = vmatprep.subr.mxu0 0.0
          %578 = vmatpush1.msra.mxu0 0.0
          %579 = vmatprep.subr.mxu0 0.0
          %580 = vmatpush1.msra.mxu0 0.0
          %581 = vmatprep.subr.mxu0 0.0
          %582 = vmatpush1.msra.mxu0 0.0
          %583 = vmatprep.subr.mxu0 0.0
          %584 = vmatpush1.msra.mxu0 0.0
          %585 = vmatprep.subr.mxu0 0.0
          %586 = vmatpush1.msra.mxu0 0.0
          %587 = vmatprep.subr.mxu0 0.0
          %588 = vmatpush1.msra.mxu0 0.0
          %589 = vmatprep.subr.mxu0 0.0
          %590 = vmatpush1.msra.mxu0 0.0
          %591 = vmatprep.subr.mxu0 0.0
          %592 = vmatpush1.msra.mxu0 0.0
          %593 = vmatprep.subr.mxu0 0.0
          %594 = vmatpush1.msra.mxu0 0.0
          %595 = vmatprep.subr.mxu0 0.0
          %596 = vmatpush1.msra.mxu0 0.0
          %597 = vmatprep.subr.mxu0 0.0
          %598 = vmatpush1.msra.mxu0 0.0
          %599 = vmatprep.subr.mxu0 0.0
          %600 = vmatpush1.msra.mxu0 0.0
          %601 = vmatprep.subr.mxu0 0.0
          %602 = vmatpush1.msra.mxu0 0.0
          %603 = vmatprep.subr.mxu0 0.0
          %604 = vmatpush1.msra.mxu0 0.0
          %605 = vmatprep.subr.mxu0 0.0
          %606 = vmatpush1.msra.mxu0 0.0
          %607 = vmatprep.subr.mxu0 0.0
          %608 = vmatpush1.msra.mxu0 0.0
          %609 = vmatprep.subr.mxu0 0.0
          %610 = vmatpush1.msra.mxu0 0.0
          %611 = vmatprep.subr.mxu0 0.0
          %612 = vmatpush1.msra.mxu0 0.0
          %613 = vmatprep.subr.mxu0 0.0
          %614 = vmatpush1.msra.mxu0 0.0
          %615 = vmatprep.subr.mxu0 0.0
          %616 = vmatpush1.msra.mxu0 0.0
          %617 = vmatprep.subr.mxu0 0.0
          %618 = vmatpush1.msra.mxu0 0.0
          %619 = vmatprep.subr.mxu0 0.0
          %620 = vmatpush1.msra.mxu0 0.0
          %621 = vmatprep.mubr.f32.mxu0 0.0
          %622 = vmatmul.mubr.f32.gmra.mrb[0].mxu0 %v534
          %v623 = vpop.f32.mrb[0].mxu0
          %v624 = vadd.f32 0.0, %v623
          %v625 = vpop.f32.mrb[0].mxu0
          %626 = vmatprep.mubr.f32.mxu0 0.0
          %627 = vmatmul.mubr.f32.gmra.mrb[0].mxu0 %v537
          %v628 = vpop.f32.mrb[0].mxu0
          %v629 = vadd.f32 0.0, %v628
          %v630 = vpop.f32.mrb[0].mxu0
          %631 = vmatprep.mubr.f32.mxu0 0.0
          %632 = vmatmul.mubr.f32.gmra.mrb[0].mxu0 %v540
          %v633 = vpop.f32.mrb[0].mxu0
          %v634 = vadd.f32 0.0, %v633
          %v635 = vpop.f32.mrb[0].mxu0
          %636 = vmatprep.mubr.f32.mxu0 0.0
          %637 = vmatmul.mubr.f32.gmra.mrb[0].mxu0 %v543
          %v638 = vpop.f32.mrb[0].mxu0
          %v639 = vadd.f32 0.0, %v638
          %v640 = vpop.f32.mrb[0].mxu0
          %641 = vmatprep.mubr.f32.mxu0 0.0
          %642 = vmatmul.mubr.f32.gmra.mrb[0].mxu0 %v546
          %v643 = vpop.f32.mrb[0].mxu0
          %v644 = vadd.f32 0.0, %v643
          %v645 = vpop.f32.mrb[0].mxu0
          %646 = vmatprep.mubr.f32.mxu0 0.0
          %647 = vmatmul.mubr.f32.gmra.mrb[0].mxu0 %v549
          %v648 = vpop.f32.mrb[0].mxu0
          %v649 = vadd.f32 0.0, %v648
          %v650 = vpop.f32.mrb[0].mxu0
          %651 = vmatprep.mubr.f32.mxu0 0.0
          %652 = vmatmul.mubr.f32.gmra.mrb[0].mxu0 %v552
          %v653 = vpop.f32.mrb[0].mxu0
          %v654 = vadd.f32 0.0, %v653
          %v655 = vpop.f32.mrb[0].mxu0
          %656 = vmatprep.mubr.f32.mxu0 0.0
          %657 = vmatmul.mubr.f32.gmra.mrb[0].mxu0 %v555
          %v658 = vpop.f32.mrb[0].mxu0
          %v659 = vadd.f32 0.0, %v658
          %v660 = vpop.f32.mrb[0].mxu0
          %661 = vdwg.mxu0
          %v662 = vmul.f32 %v624, 0.5
          %v663 = vmul.f32 %v629, 0.5
          %v664 = vmul.f32 %v634, 0.5
          %v665 = vmul.f32 %v639, 0.5
          %v666 = vmul.f32 %v644, 0.5
          %v667 = vmul.f32 %v649, 0.5
          %v668 = vmul.f32 %v654, 0.5
          %v669 = vmul.f32 %v659, 0.5
          %v670 = vld [vmem:[%s5] sm:$0x1]
          %v672 = vlaneseq
          %v673 = vshrl.u32 %v672, 7
          %v674 = vsub.s32 0, %v673
          %v675 = vrot.slane %v670, %v674
          %v677 = vadd.f32 %v662, %v675
          %v678 = vadd.f32 %v663, %v675
          %v679 = vadd.f32 %v664, %v675
          %v680 = vadd.f32 %v665, %v675
          %v681 = vadd.f32 %v666, %v675
          %v682 = vadd.f32 %v667, %v675
          %v683 = vadd.f32 %v668, %v675
          %v684 = vadd.f32 %v669, %v675
          %vm685 = vcmask 523264
          %686 = vst.msk [vmem:[#allocation2] sm:$0xff] %vm685, %v677
          %687 = vst.msk [vmem:[#allocation2 + $0x8] sm:$0xff] %vm685, %v678
          %688 = vst.msk [vmem:[#allocation2 + $0x10] sm:$0xff] %vm685, %v679
          %689 = vst.msk [vmem:[#allocation2 + $0x18] sm:$0xff] %vm685, %v680
          %690 = vst.msk [vmem:[#allocation2 + $0x20] sm:$0xff] %vm685, %v681
          %691 = vst.msk [vmem:[#allocation2 + $0x28] sm:$0xff] %vm685, %v682
          %692 = vst.msk [vmem:[#allocation2 + $0x30] sm:$0xff] %vm685, %v683
          %693 = vst.msk [vmem:[#allocation2 + $0x38] sm:$0xff] %vm685, %v684
          %694 = vst.msk [vmem:[%s346] sm:$0xff] %vm685, %v677
          %695 = vst.msk [vmem:[%s346 + $0x8] sm:$0xff] %vm685, %v678
          %696 = vst.msk [vmem:[%s346 + $0x10] sm:$0xff] %vm685, %v679
          %697 = vst.msk [vmem:[%s346 + $0x18] sm:$0xff] %vm685, %v680
          %698 = vst.msk [vmem:[%s346 + $0x20] sm:$0xff] %vm685, %v681
          %699 = vst.msk [vmem:[%s346 + $0x28] sm:$0xff] %vm685, %v682
          %700 = vst.msk [vmem:[%s346 + $0x30] sm:$0xff] %vm685, %v683
          %701 = vst.msk [vmem:[%s346 + $0x38] sm:$0xff] %vm685, %v684
        $region52: #{tpu_custom_call.1} parent=35 // pred_fallthru
          _
        %p702 = scmp.eq.s32.totalorder %s41, 1
        %p703 = scmp.ne.s32.totalorder %s362, %s363
        %p704 = pnand %p702, %p703
        %p705 = pneg %p704
        // Predicated region
        $region53: #{tpu_custom_call.1} parent=35 // pred_check
          _
        $region54: #{tpu_custom_call.1} parent=35 // pred_check_branch
          %707 = sbr.rel (%p704) target = $region56
        $region55: #{tpu_custom_call.1} parent=35 // pred_region
          %v708 = vld [vmem:[#allocation2] sm:$0xff]
          %v709 = vld [vmem:[#allocation2 + $0x8] sm:$0xff]
          %v710 = vld [vmem:[#allocation2 + $0x10] sm:$0xff]
          %v711 = vld [vmem:[#allocation2 + $0x18] sm:$0xff]
          %v712 = vld [vmem:[#allocation2 + $0x20] sm:$0xff]
          %v713 = vld [vmem:[#allocation2 + $0x28] sm:$0xff]
          %v714 = vld [vmem:[#allocation2 + $0x30] sm:$0xff]
          %v715 = vld [vmem:[#allocation2 + $0x38] sm:$0xff]
          %v716 = vcombine.low %v708, %v710
          %v717 = vcombine.high %v708, %v710
          %v719 = vunpack.c.l.s4 1983009808
          %v720 = vunpack.c.0.s8 %v719
          %v721 = vlaneseq
          %v722 = vshrl.u32 %v721, 7
          %v723 = vsub.s32 %v720, %v722
          %v724 = vrot.slane %v716, %v723
          %v726 = vunpack.c.l.s4 1983009808
          %v727 = vunpack.c.0.s8 %v726
          %v728 = vlaneseq
          %v729 = vshrl.u32 %v728, 7
          %v730 = vsub.s32 %v727, %v729
          %v731 = vrot.slane %v717, %v730
          %v732 = vcombine.low %v709, %v711
          %v733 = vcombine.high %v709, %v711
          %v735 = vunpack.c.l.s4 1983009808
          %v736 = vunpack.c.0.s8 %v735
          %v737 = vlaneseq
          %v738 = vshrl.u32 %v737, 7
          %v739 = vsub.s32 %v736, %v738
          %v740 = vrot.slane %v732, %v739
          %v742 = vunpack.c.l.s4 1983009808
          %v743 = vunpack.c.0.s8 %v742
          %v744 = vlaneseq
          %v745 = vshrl.u32 %v744, 7
          %v746 = vsub.s32 %v743, %v745
          %v747 = vrot.slane %v733, %v746
          %v748 = vcombine.low %v712, %v714
          %v749 = vcombine.high %v712, %v714
          %v751 = vunpack.c.l.s4 1983009808
          %v752 = vunpack.c.0.s8 %v751
          %v753 = vlaneseq
          %v754 = vshrl.u32 %v753, 7
          %v755 = vsub.s32 %v752, %v754
          %v756 = vrot.slane %v748, %v755
          %v758 = vunpack.c.l.s4 1983009808
          %v759 = vunpack.c.0.s8 %v758
          %v760 = vlaneseq
          %v761 = vshrl.u32 %v760, 7
          %v762 = vsub.s32 %v759, %v761
          %v763 = vrot.slane %v749, %v762
          %v764 = vcombine.low %v713, %v715
          %v765 = vcombine.high %v713, %v715
          %v767 = vunpack.c.l.s4 1983009808
          %v768 = vunpack.c.0.s8 %v767
          %v769 = vlaneseq
          %v770 = vshrl.u32 %v769, 7
          %v771 = vsub.s32 %v768, %v770
          %v772 = vrot.slane %v764, %v771
          %v774 = vunpack.c.l.s4 1983009808
          %v775 = vunpack.c.0.s8 %v774
          %v776 = vlaneseq
          %v777 = vshrl.u32 %v776, 7
          %v778 = vsub.s32 %v775, %v777
          %v779 = vrot.slane %v765, %v778
          %v780 = vcombine.low %v724, %v740
          %v781 = vcombine.high %v724, %v740
          %v783 = vunpack.c.l.s4 1934713408
          %v784 = vunpack.c.0.s8 %v783
          %v785 = vlaneseq
          %v786 = vshrl.u32 %v785, 7
          %v787 = vsub.s32 %v784, %v786
          %v788 = vrot.slane %v780, %v787
          %v790 = vunpack.c.l.s4 1934713408
          %v791 = vunpack.c.0.s8 %v790
          %v792 = vlaneseq
          %v793 = vshrl.u32 %v792, 7
          %v794 = vsub.s32 %v791, %v793
          %v795 = vrot.slane %v781, %v794
          %v796 = vcombine.low %v731, %v747
          %v797 = vcombine.high %v731, %v747
          %v799 = vunpack.c.l.s4 1934713408
          %v800 = vunpack.c.0.s8 %v799
          %v801 = vlaneseq
          %v802 = vshrl.u32 %v801, 7
          %v803 = vsub.s32 %v800, %v802
          %v804 = vrot.slane %v796, %v803
          %v806 = vunpack.c.l.s4 1934713408
          %v807 = vunpack.c.0.s8 %v806
          %v808 = vlaneseq
          %v809 = vshrl.u32 %v808, 7
          %v810 = vsub.s32 %v807, %v809
          %v811 = vrot.slane %v797, %v810
          %v812 = vcombine.low %v756, %v772
          %v813 = vcombine.high %v756, %v772
          %v815 = vunpack.c.l.s4 1934713408
          %v816 = vunpack.c.0.s8 %v815
          %v817 = vlaneseq
          %v818 = vshrl.u32 %v817, 7
          %v819 = vsub.s32 %v816, %v818
          %v820 = vrot.slane %v812, %v819
          %v822 = vunpack.c.l.s4 1934713408
          %v823 = vunpack.c.0.s8 %v822
          %v824 = vlaneseq
          %v825 = vshrl.u32 %v824, 7
          %v826 = vsub.s32 %v823, %v825
          %v827 = vrot.slane %v813, %v826
          %v828 = vcombine.low %v763, %v779
          %v829 = vcombine.high %v763, %v779
          %v831 = vunpack.c.l.s4 1934713408
          %v832 = vunpack.c.0.s8 %v831
          %v833 = vlaneseq
          %v834 = vshrl.u32 %v833, 7
          %v835 = vsub.s32 %v832, %v834
          %v836 = vrot.slane %v828, %v835
          %v838 = vunpack.c.l.s4 1934713408
          %v839 = vunpack.c.0.s8 %v838
          %v840 = vlaneseq
          %v841 = vshrl.u32 %v840, 7
          %v842 = vsub.s32 %v839, %v841
          %v843 = vrot.slane %v829, %v842
          %v844 = vcombine.low %v788, %v820
          %v845 = vcombine.high %v788, %v820
          %v846 = vcombine.low %v795, %v827
          %v847 = vcombine.high %v795, %v827
          %v848 = vcombine.low %v804, %v836
          %v849 = vcombine.high %v804, %v836
          %v850 = vcombine.low %v811, %v843
          %v851 = vcombine.high %v811, %v843
          %vm852 = vcmask 523264
          %853 = vst.msk [vmem:[%s346] sm:$0xff] %vm852, %v844
          %854 = vst.msk [vmem:[%s346 + $0x8] sm:$0xff] %vm852, %v845
          %855 = vst.msk [vmem:[%s346 + $0x10] sm:$0xff] %vm852, %v846
          %856 = vst.msk [vmem:[%s346 + $0x18] sm:$0xff] %vm852, %v847
          %857 = vst.msk [vmem:[%s346 + $0x20] sm:$0xff] %vm852, %v848
          %858 = vst.msk [vmem:[%s346 + $0x28] sm:$0xff] %vm852, %v849
          %859 = vst.msk [vmem:[%s346 + $0x30] sm:$0xff] %vm852, %v850
          %860 = vst.msk [vmem:[%s346 + $0x38] sm:$0xff] %vm852, %v851
        $region56: #{tpu_custom_call.1} parent=35 // pred_fallthru
          _
        %s861 = sand.u32 %s191, 1
        %s862 = scalar_lea.sflag [#allocation8], %s861
        %s863 = sand.u32 %s191, 1
        %s864 = smul.addr %s863, 64
        %s865 = scalar_lea.vmem [#allocation12], %s864
        // Predicated region
        $region57: #{tpu_custom_call.1} parent=35 // pred_check
          %p866 = pneg %p201
        $region58: #{tpu_custom_call.1} parent=35 // pred_check_branch
          %868 = sbr.rel (%p866) target = $region60
        $region59: #{tpu_custom_call.1} parent=35 // pred_region
          %s869 = sld [smem:[#allocation4 + %s40]]
          %s870 = sld [smem:[#allocation5 + %s40]]
          %s871 = ssub.s32 %s870, %s869
          %s872 = smul.u32 %s871, %s41
          %s873 = sadd.s32 %s869, %s872
          %s874 = ssub.s32 %s869, %s870
          %s875 = smul.u32 %s874, %s41
          %s876 = sadd.s32 %s870, %s875
          %s877 = smul.u32 8, %s873
          %s879 = ssub.s32 1024, 1024
          %880 = vsyncadd %s862, %s879
          %s881 = smul.addr %s877, 2
          %s882 = sadd.s32 %s876, %s881
          %s883 = smul.addr %s39, 32
          %s884 = sadd.s32 %s882, %s883
          %s885 = smul.addr %s884, 128
          %s886 = scalar_lea.hbm %s6, %s885
          %s887 = sshll.u32 %s865, 4
          %s888 = int_to_ptr.vmem [resolvable:$true] %s887
          %893 = dma.vmem_to_hbm [thread:$0]  %s888, 1024, %s886, %s862, 128, 256, 8
        $region60: #{tpu_custom_call.1} parent=35 // pred_fallthru
          _
      $region36: #{tpu_custom_call.1} parent=5 // pred_fallthru
        _
      %p894 = scmp.le.s32.totalorder 2, %s29
      // Predicated region
      $region61: #{tpu_custom_call.1} parent=5 // pred_check
        %p895 = pneg %p894
      $region62: #{tpu_custom_call.1} parent=5 // pred_check_branch
        %897 = sbr.rel (%p895) target = $region64
      $region63: #{tpu_custom_call.1} parent=5 // pred_region
        %s898 = ssub.s32 %s29, 2
        // Predicated region
        $region65: #{tpu_custom_call.1} parent=63 // pred_check
          %p899 = pneg %p207
        $region66: #{tpu_custom_call.1} parent=63 // pred_check_branch
          %901 = sbr.rel (%p899) target = $region68
        $region67: #{tpu_custom_call.1} parent=63 // pred_region
          %s902 = sand.u32 %s192, 1
          %s903 = scalar_lea.sflag [#allocation8], %s902
          %s904 = sand.u32 %s192, 1
          %s905 = smul.addr %s904, 64
          %s906 = scalar_lea.vmem [#allocation12], %s905
          %907 = dma.done %s903, 1024
        $region68: #{tpu_custom_call.1} parent=63 // pred_fallthru
          _
      $region64: #{tpu_custom_call.1} parent=5 // pred_fallthru
        _
    $region6: #{tpu_custom_call.1} parent=1 // loop_footer
      %s33 = sadd.s32 1, %s29
    $region7: #{tpu_custom_call.1} parent=1 // loop_footer_branch
      %28 = sbr.rel target = $region3
    $region8: #{tpu_custom_call.1} parent=1 // loop_exit
      _
    %908 = vsyncpa [#allocation7], 1
    %s909 = scalar_lea.sflag [#allocation7], 1
    %910 = vsyncpa %s909, 1
    %911 = vsyncpa [#allocation10], 1
    %s912 = scalar_lea.sflag [#allocation10], 1
    %913 = vsyncpa %s912, 1
    %914 = vsyncpa [#allocation8], 1
    %s915 = scalar_lea.sflag [#allocation8], 1
    %916 = vsyncpa %s915, 1

</llo_original>
